<compile_context>
chip_gen: v6e
topology: v6e:2x2x1
jax: 0.10.0
libtpu: 0.0.40
codegen_flags: <defaults>
</compile_context>

<pallas_src>
import math

import jax
import jax.numpy as jnp
from jax.experimental import pallas as pl
from jax.experimental.pallas import tpu as pltpu


def gating_kernel(params_ref, x_ref, w_ref, o_ref):
    # params_ref: SMEM (3,)      -> [alpha, beta, bias]
    # x_ref:      VMEM (R, H)    -> one row tile of the (S*B, H) view of x
    # w_ref:      VMEM (1, H)    -> nn.Linear(H, 1) weight (resident)
    # o_ref:      VMEM (R, 1)    -> gate values for this row tile
    alpha = params_ref[0]
    beta = params_ref[1]
    bias = params_ref[2]

    x = x_ref[...].astype(jnp.float32)                    # (R, H)
    w = w_ref[...]                                        # (1, H) f32

    # Linear(H, 1): broadcast-mul on the VPU + lane reduce on the XLU.
    proj = jnp.sum(x * w, axis=1, keepdims=True) + bias   # (R, 1)

    # gate = cos(alpha * proj + beta); tiny (R elements) elementwise tail.
    o_ref[...] = jnp.cos(alpha * proj + beta).astype(o_ref.dtype)


def _pick_row_tile(n_rows, hidden, itemsize, budget_bytes=8 * 1024 * 1024):
    """Largest row tile (multiple of 8) whose padded VMEM footprint fits."""
    if n_rows % 8 != 0:
        # TODO(synk): S*B not a multiple of 8 falls back to a single
        # whole-array block; a huge unaligned S*B would need an H-tiled grid.
        return n_rows
    pad_h = ((hidden + 127) // 128) * 128
    bytes_per_row = pad_h * (itemsize + 4)      # input tile + f32 temporaries
    rows = budget_bytes // bytes_per_row
    rows = max(8, (rows // 8) * 8)
    return int(min(n_rows, rows))


def content_dependent_gating(x, weight, bias, alpha, beta, *, row_tile=None):
    """x: (S, B, H); weight: (1, H); bias/alpha/beta: (1,). Returns (B, S)."""
    S, B, H = x.shape
    N = S * B
    itemsize = jnp.dtype(x.dtype).itemsize

    r = row_tile if row_tile is not None else _pick_row_tile(N, H, itemsize)
    assert r == N or r % 8 == 0, "row tile must be a multiple of 8 (or S*B)"
    grid = (pl.cdiv(N, r),)

    x2d = x.reshape(N, H)                        # contiguous: no data movement
    w = weight.astype(jnp.float32)               # (1, H)
    params = jnp.concatenate(
        [alpha.astype(jnp.float32), beta.astype(jnp.float32),
         bias.astype(jnp.float32)]
    )                                            # (3,) -> SMEM

    cost = pl.CostEstimate(
        flops=2 * N * H + 4 * N,
        transcendentals=N,
        bytes_accessed=N * H * itemsize + N * itemsize + H * 4 + 3 * 4,
    )

    gate_flat = pl.pallas_call(
        gating_kernel,
        out_shape=jax.ShapeDtypeStruct((N, 1), x.dtype),
        grid=grid,
        in_specs=[
            # scalars (alpha, beta, bias) live in SMEM, untiled
            pl.BlockSpec(memory_space=pltpu.MemorySpace.SMEM),
            # x: pipelined, double-buffered (r, H) row tiles (contiguous DMA)
            pl.BlockSpec((r, H), lambda i: (i, 0)),
            # weight: resident, constant index_map (no re-DMA per grid step)
            pl.BlockSpec((1, H), lambda i: (0, 0)),
        ],
        out_specs=pl.BlockSpec((r, 1), lambda i: (i, 0)),
        compiler_params=pltpu.CompilerParams(
            dimension_semantics=("parallel",),
            vmem_limit_bytes=32 * 1024 * 1024,
        ),
        cost_estimate=cost,
    )(params, x2d, w)

    # (S*B, 1) -> (S, B) -> (B, S): tiny XLA transpose (1/H of the input
    # bytes), fused when the wrapper is jitted.
    return gate_flat.reshape(S, B).T


def _reference(x, weight, bias, alpha, beta):
    proj = x @ weight[0] + bias[0]                     # (S, B)
    return jnp.cos(alpha[0] * proj + beta[0]).T        # (B, S)


def _make_inputs(key, S, B, H):
    k_x, k_w, k_b, k_a, k_be = jax.random.split(key, 5)
    bound = 1.0 / math.sqrt(H)
    weight = jax.random.uniform(k_w, (1, H), jnp.float32, -bound, bound)
    bias = jax.random.uniform(k_b, (1,), jnp.float32, -bound, bound)
    alpha = jax.random.normal(k_a, (1,), jnp.float32)
    beta = jax.random.normal(k_be, (1,), jnp.float32)
    x = jax.random.normal(k_x, (S, B, H), jnp.float32)
    return x, weight, bias, alpha, beta


if __name__ == "__main__":
    key = jax.random.PRNGKey(0)
    k0, k1 = jax.random.split(key, 2)

    fn = jax.jit(content_dependent_gating, static_argnames=("row_tile",))

    # Small shape consistent with the module: (seq=8, batch=2, hidden=32).
    S, B, H = 8, 2, 32
    x, weight, bias, alpha, beta = _make_inputs(k0, S, B, H)
    out = jax.block_until_ready(fn(x, weight, bias, alpha, beta))
    ref = _reference(x, weight, bias, alpha, beta)
    assert out.shape == (B, S)
    assert jnp.allclose(out, ref, atol=2e-5, rtol=2e-5)

    # Second check exercising the multi-step pipelined grid: 2048 rows in
    # four 512-row tiles.
    S2, B2, H2 = 512, 4, 128
    x2, w2, b2, a2, be2 = _make_inputs(k1, S2, B2, H2)
    out2 = jax.block_until_ready(fn(x2, w2, b2, a2, be2, row_tile=512))
    ref2 = _reference(x2, w2, b2, a2, be2)
    assert out2.shape == (B2, S2)
    assert jnp.allclose(out2, ref2, atol=2e-5, rtol=2e-5)

    print("KERNEL_OK")
</pallas_src>

<mosaic_0001>
module attributes {stable_mosaic.version = 11 : i64} {
  func.func @gating_kernel(%arg0: i32, %arg1: memref<3xf32, #tpu.memory_space<smem>>, %arg2: memref<16x32xf32, #tpu.memory_space<vmem>>, %arg3: memref<1x32xf32, #tpu.memory_space<vmem>>, %arg4: memref<16x1xf32, #tpu.memory_space<vmem>>) attributes {dimension_semantics = [#tpu.dimension_semantics<parallel>], iteration_bounds = array<i64: 1>, scalar_prefetch = 0 : i64, scratch_operands = 0 : i64, tpu.core_type = #tpu.core_type<tc>, window_params = [{transform_indices = @transform_0, window_bounds = array<i64: 3>}, {transform_indices = @transform_1, window_bounds = array<i64: 16, 32>}, {pipeline_mode = #tpu.pipeline_mode<synchronous>, transform_indices = @transform_2, window_bounds = array<i64: 1, 32>}, {transform_indices = @transform_3, window_bounds = array<i64: 16, 1>}]} {
    %c0 = arith.constant 0 : index
    %0 = memref.load %arg1[%c0] : memref<3xf32, #tpu.memory_space<smem>>
    %c1 = arith.constant 1 : index
    %1 = memref.load %arg1[%c1] : memref<3xf32, #tpu.memory_space<smem>>
    %c2 = arith.constant 2 : index
    %2 = memref.load %arg1[%c2] : memref<3xf32, #tpu.memory_space<smem>>
    %c0_0 = arith.constant 0 : index
    %c0_1 = arith.constant 0 : index
    %3 = vector.load %arg2[%c0_0, %c0_1] : memref<16x32xf32, #tpu.memory_space<vmem>>, vector<16x32xf32>
    %c0_2 = arith.constant 0 : index
    %c0_3 = arith.constant 0 : index
    %4 = vector.load %arg3[%c0_2, %c0_3] : memref<1x32xf32, #tpu.memory_space<vmem>>, vector<1x32xf32>
    %5 = vector.broadcast %4 : vector<1x32xf32> to vector<16x32xf32>
    %6 = arith.mulf %3, %5 : vector<16x32xf32>
    %cst = arith.constant dense<0.000000e+00> : vector<16xf32>
    %7 = vector.multi_reduction <add>, %6, %cst [1] : vector<16x32xf32> to vector<16xf32>
    %8 = vector.shape_cast %7 : vector<16xf32> to vector<16x1xf32>
    %9 = vector.broadcast %2 : f32 to vector<16x1xf32>
    %10 = arith.addf %8, %9 : vector<16x1xf32>
    %11 = vector.broadcast %0 : f32 to vector<16x1xf32>
    %12 = arith.mulf %11, %10 : vector<16x1xf32>
    %13 = vector.broadcast %1 : f32 to vector<16x1xf32>
    %14 = arith.addf %12, %13 : vector<16x1xf32>
    %15 = math.cos %14 : vector<16x1xf32>
    %c0_4 = arith.constant 0 : index
    %c0_5 = arith.constant 0 : index
    %16 = vector.load %arg4[%c0_4, %c0_5] : memref<16x1xf32, #tpu.memory_space<vmem>>, vector<16x1xf32>
    tpu.vector_store %arg4[%c0_4, %c0_5], %15 {strides = array<i32>} : memref<16x1xf32, #tpu.memory_space<vmem>>, vector<16x1xf32>,
    return
  }
  func.func @transform_0(%arg0: i32) -> i32 {
    %c0_i32 = arith.constant 0 : i32
    %c0_i32_0 = arith.constant 0 : i32
    return %c0_i32 : i32
  }
  func.func @transform_1(%arg0: i32) -> (i32, i32) {
    %c0_i32 = arith.constant 0 : i32
    %c0_i32_0 = arith.constant 0 : i32
    return %arg0, %c0_i32 : i32, i32
  }
  func.func @transform_2(%arg0: i32) -> (i32, i32) {
    %c0_i32 = arith.constant 0 : i32
    %c0_i32_0 = arith.constant 0 : i32
    %c0_i32_1 = arith.constant 0 : i32
    return %c0_i32, %c0_i32_0 : i32, i32
  }
  func.func @transform_3(%arg0: i32) -> (i32, i32) {
    %c0_i32 = arith.constant 0 : i32
    %c0_i32_0 = arith.constant 0 : i32
    return %arg0, %c0_i32 : i32, i32
  }
}

</mosaic_0001>

<llo_original>
// kernel: content_dependent_gating.1
$region0: #{content_dependent_gating.1}
  #allocation0 [shape = 'u32[]', space=smem, size = 0x4, offset = 0x4, fixed_abs, tag = 'smem constant byte address 0x4 - core index']
  #allocation1 [shape = 'u32[144,128]{1,0:T(1,128)}', space=vmem, size = 0x12000, scoped, tag = 'internal scratch']
  %s0 = inlined_call_operand.vmem [shape: f32[3], index: 0, kind: input, shape index: {}]
  %s1 = inlined_call_operand.hbm [shape: f32[16,32], index: 1, kind: input, shape index: {}]
  %s2 = inlined_call_operand.vmem [shape: f32[1,32], index: 2, kind: input, shape index: {}]
  %s3 = inlined_call_operand.vmem [shape: f32[16,1], index: 3, kind: output, shape index: {}]
  %s4 = sld [smem:[#allocation0]]
  $region30: #{content_dependent_gating.1} parent=0
    _
  %s6 = ssub.s32 1, %s4
  %s7 = scalar_select 0, %s6, %s4
  $region1: #{content_dependent_gating.1} parent=0
    #allocation2 [shape = 'u8[512]{0}', space=smem, size = 0x200, scoped, tag = 'input window, operand 0, single buffered']
    #allocation3 [shape = 's32[1]{0}', space=sflag, size = 0x4, scoped, tag = 'scoped memory for content_dependent_gating.1']
    #allocation4 [shape = 's32[1]{0}', space=sflag, size = 0x4, scoped, tag = 'scoped memory for content_dependent_gating.1']
    #allocation5 [shape = 'u8[8192]{0}', space=vmem, size = 0x2000, scoped, tag = 'input window, operand 1, single buffered']
    %8 = vsyncpa [#allocation4], 0
    %9 = vsyncpa [#allocation3], 0
    // Predicated region
    $region2: #{content_dependent_gating.1} parent=1 // pred_check
      _
    $region3: #{content_dependent_gating.1} parent=1 // pred_check_branch
      %11 = sbr.rel (0) target = $region5
    $region4: #{content_dependent_gating.1} parent=1 // pred_region
      %s13 = ssub.s32 16, 16
      %14 = vsyncadd [#allocation4], %s13
      %s16 = sshll.u32 %s0, 4
      %s17 = int_to_ptr.vmem [resolvable:$true] %s16
      %19 = dma.vmem_to_smem %s17, 16, [#allocation2], [#allocation4]
    $region5: #{content_dependent_gating.1} parent=1 // pred_fallthru
      _
    // Predicated region
    $region6: #{content_dependent_gating.1} parent=1 // pred_check
      _
    $region7: #{content_dependent_gating.1} parent=1 // pred_check_branch
      %21 = sbr.rel (0) target = $region9
    $region8: #{content_dependent_gating.1} parent=1 // pred_region
      %s23 = ssub.s32 256, 256
      %24 = vsyncadd [#allocation3], %s23
      %s25 = sshll.u32 [#allocation5], 4
      %s26 = int_to_ptr.vmem [resolvable:$true] %s25
      %31 = dma.hbm_to_vmem [thread:$0]  %s1, 256, %s26, [#allocation3], 128, 128, 8
    $region9: #{content_dependent_gating.1} parent=1 // pred_fallthru
      _
    // Predicated region
    $region10: #{content_dependent_gating.1} parent=1 // pred_check
      _
    $region11: #{content_dependent_gating.1} parent=1 // pred_check_branch
      %33 = sbr.rel (0) target = $region13
    $region12: #{content_dependent_gating.1} parent=1 // pred_region
      _
    $region13: #{content_dependent_gating.1} parent=1 // pred_fallthru
      _
    // Predicated region
    $region14: #{content_dependent_gating.1} parent=1 // pred_check
      _
    $region15: #{content_dependent_gating.1} parent=1 // pred_check_branch
      %35 = sbr.rel (0) target = $region17
    $region16: #{content_dependent_gating.1} parent=1 // pred_region
      %36 = dma.done [#allocation4], 16
    $region17: #{content_dependent_gating.1} parent=1 // pred_fallthru
      _
    // Predicated region
    $region18: #{content_dependent_gating.1} parent=1 // pred_check
      _
    $region19: #{content_dependent_gating.1} parent=1 // pred_check_branch
      %38 = sbr.rel (0) target = $region21
    $region20: #{content_dependent_gating.1} parent=1 // pred_region
      %39 = dma.done [#allocation3], 256
    $region21: #{content_dependent_gating.1} parent=1 // pred_fallthru
      _
    %40 = sfence
    %s41 = sld [smem:[#allocation2]]
    %s42 = sld [smem:[#allocation2 + $0x1]]
    %s43 = sld [smem:[#allocation2 + $0x2]]
    %v44 = vld [vmem:[#allocation5] sm:$0xff]
    %v45 = vld [vmem:[#allocation5 + $0x8] sm:$0xff]
    %v46 = vld [vmem:[%s2] sm:$0x1]
    %v48 = vlaneseq
    %v49 = vshrl.u32 %v48, 7
    %v50 = vsub.s32 0, %v49
    %v51 = vrot.slane %v46, %v50
    %v53 = vmul.f32 %v44, %v51
    %v54 = vmul.f32 %v45, %v51
    %vm55 = vcmask 261120
    %v56 = vsel %vm55, %v53, 0.0
    %57 = vadd.xlane.f32.xlu0 %v56
    %v58 = vpop.xlane.xlu0 %57
    %v59 = vsel %vm55, %v54, 0.0
    %60 = vadd.xlane.f32.xlu0 %v59
    %v61 = vpop.xlane.xlu0 %60
    %v62 = vstv %s43
    %v63 = vadd.f32 %v58, %v62
    %v64 = vadd.f32 %v61, %v62
    %v65 = vstv %s41
    %v66 = vmul.f32 %v65, %v63
    %v67 = vmul.f32 %v65, %v64
    %v68 = vstv %s42
    %v69 = vadd.f32 %v66, %v68
    %v70 = vadd.f32 %v67, %v68
    %v71 = vand.u32 2147483647, %v69
    %vm72 = vcmp.le.f32.partialorder %v71, 0.7853982
    %vm73 = vcmp.lt.s32.totalorder %v69, 0
    %v74 = vand.u32 %v69, 2139095040
    %v75 = vshrl.u32 %v74, 23
    %v76 = vsub.s32 %v75, 127
    %v77 = vand.u32 2147483647, %v69
    %v78 = vand.u32 %v77, 8388607
    %v79 = vor.u32 %v78, 8388608
    %v80 = vsub.s32 0, %v79
    %v81 = vadd.s32 %v76, 1
    %vm82 = vcmp.gt.s32.totalorder %v81, 0
    %v83 = vsel %vm82, %v81, 0
    %v84 = vshrl.u32 %v83, 5
    %v85 = vand.u32 %v83, 31
    %v86 = vsub.s32 32, %v85
    %v87 = vshrl.u32 683565275, %v86
    %v88 = vshll.u32 683565275, %v85
    %v89 = vshrl.u32 2475754826, %v86
    %v90 = vor.u32 %v88, %v89
    %v91 = vshll.u32 2475754826, %v85
    %v92 = vshrl.u32 2131351028, %v86
    %v93 = vor.u32 %v91, %v92
    %v94 = vshll.u32 2131351028, %v85
    %v95 = vshrl.u32 2102212464, %v86
    %v96 = vor.u32 %v94, %v95
    %v97 = vshll.u32 2102212464, %v85
    %v98 = vshrl.u32 920167782, %v86
    %v99 = vor.u32 %v97, %v98
    %v100 = vshll.u32 920167782, %v85
    %v101 = vshrl.u32 1326507024, %v86
    %v102 = vor.u32 %v100, %v101
    %vm103 = vcmp.lt.s32.totalorder %v84, 1
    %vm104 = vcmp.lt.s32.totalorder %v84, 2
    %vm105 = vcmp.lt.s32.totalorder %v84, 3
    %vm106 = vcmp.lt.s32.totalorder %v84, 4
    %v107 = vsel %vm103, %v87, %v90
    %v108 = vsel %vm106, %v96, 2102212464
    %v109 = vsel %vm105, %v93, %v108
    %v110 = vsel %vm104, %v107, %v109
    %v111 = vsel %vm103, %v90, %v93
    %v112 = vsel %vm106, %v99, 920167782
    %v113 = vsel %vm105, %v96, %v112
    %v114 = vsel %vm104, %v111, %v113
    %v115 = vsel %vm103, %v93, %v96
    %v116 = vsel %vm106, %v102, 1326507024
    %v117 = vsel %vm105, %v99, %v116
    %v118 = vsel %vm104, %v115, %v117
    %v119 = vshll.u32 %v79, 8
    %v120 = vmul.u32.u64.compose %v119, %v118
    %v121 = vextract.low.u32 %v120
    %v122 = vextract.high.u32 %v120
    %v123 = vmul.u32.u64.compose %v119, %v114
    %v124 = vextract.low.u32 %v123
    %v125 = vextract.high.u32 %v123
    %v126 = vmul.u32 %v119, %v110
    %v127 = vadd.s32 %v122, %v124
    %vm128 = vc.u32 %v122, %v124
    %v129 = vadd.s32 %v125, 1
    %v130 = vsel %vm128, %v129, %v125
    %v131 = vadd.s32 %v126, %v130
    %v132 = vadd.s32 %v131, 536870912
    %v133 = vshrl.u32 %v132, 30
    %v134 = vshll.u32 %v133, 30
    %v135 = vsub.s32 %v131, %v134
    %vm136 = vcmp.lt.s32.totalorder %v135, 0
    %v137 = vsub.s32 0, %v135
    %v138 = vsel %vm136, %v137, %v135
    %v139 = vclz %v138
    %v140 = vsub.s32 %v139, 2
    %vm141 = vcmp.gt.s32.totalorder 0, %v140
    %v142 = vsel %vm141, 0, %v140
    %v143 = vsub.s32 32, %v142
    %v144 = vshll.u32 %v135, %v142
    %v145 = vshrl.u32 %v127, %v143
    %v146 = vor.u32 %v144, %v145
    %v147 = vsub.s32 4294967266, %v142
    %v148 = vadd.s32 %v147, 127
    %v149 = vshll.u32 %v148, 23
    %v150 = vor.u32 4788187, %v149
    %v151 = vand.u32 2147483647, %v150
    %v153 = vcvt.s32.f32 %v146
    %v154 = vmul.f32 %v153, %v151
    %v155 = vxor.u32 %v154, 2147483648
    %v156 = vsel %vm73, %v155, %v154
    %v157 = vsub.s32 4, %v133
    %v158 = vsel %vm73, %v157, %v133
    %v159 = vsel %vm72, %v69, %v156
    %v160 = vsel %vm72, 0, %v158
    %v161 = vcosq.f32.pop %v159
    %v162 = vsinq.f32.pop %v159
    %vm163 = vweird.f32 %v69
    %v164 = vand.u32 %v160, 3
    %vm165 = vcmp.lt.s32.totalorder %v164, 2
    %vm166 = vcmp.eq.s32.totalorder %v164, 0
    %v167 = vxor.u32 %v162, 2147483648
    %v168 = vsel %vm166, %v161, %v167
    %vm169 = vcmp.eq.s32.totalorder %v164, 2
    %v170 = vxor.u32 %v161, 2147483648
    %v171 = vsel %vm169, %v170, %v162
    %v172 = vsel %vm165, %v168, %v171
    %v173 = vsel %vm163, nan, %v172
    %v174 = vand.u32 2147483647, %v70
    %vm175 = vcmp.le.f32.partialorder %v174, 0.7853982
    %vm176 = vcmp.lt.s32.totalorder %v70, 0
    %v177 = vand.u32 %v70, 2139095040
    %v178 = vshrl.u32 %v177, 23
    %v179 = vsub.s32 %v178, 127
    %v180 = vand.u32 2147483647, %v70
    %v181 = vand.u32 %v180, 8388607
    %v182 = vor.u32 %v181, 8388608
    %v183 = vsub.s32 0, %v182
    %v184 = vadd.s32 %v179, 1
    %vm185 = vcmp.gt.s32.totalorder %v184, 0
    %v186 = vsel %vm185, %v184, 0
    %v187 = vshrl.u32 %v186, 5
    %v188 = vand.u32 %v186, 31
    %v189 = vsub.s32 32, %v188
    %v190 = vshrl.u32 683565275, %v189
    %v191 = vshll.u32 683565275, %v188
    %v192 = vshrl.u32 2475754826, %v189
    %v193 = vor.u32 %v191, %v192
    %v194 = vshll.u32 2475754826, %v188
    %v195 = vshrl.u32 2131351028, %v189
    %v196 = vor.u32 %v194, %v195
    %v197 = vshll.u32 2131351028, %v188
    %v198 = vshrl.u32 2102212464, %v189
    %v199 = vor.u32 %v197, %v198
    %v200 = vshll.u32 2102212464, %v188
    %v201 = vshrl.u32 920167782, %v189
    %v202 = vor.u32 %v200, %v201
    %v203 = vshll.u32 920167782, %v188
    %v204 = vshrl.u32 1326507024, %v189
    %v205 = vor.u32 %v203, %v204
    %vm206 = vcmp.lt.s32.totalorder %v187, 1
    %vm207 = vcmp.lt.s32.totalorder %v187, 2
    %vm208 = vcmp.lt.s32.totalorder %v187, 3
    %vm209 = vcmp.lt.s32.totalorder %v187, 4
    %v210 = vsel %vm206, %v190, %v193
    %v211 = vsel %vm209, %v199, 2102212464
    %v212 = vsel %vm208, %v196, %v211
    %v213 = vsel %vm207, %v210, %v212
    %v214 = vsel %vm206, %v193, %v196
    %v215 = vsel %vm209, %v202, 920167782
    %v216 = vsel %vm208, %v199, %v215
    %v217 = vsel %vm207, %v214, %v216
    %v218 = vsel %vm206, %v196, %v199
    %v219 = vsel %vm209, %v205, 1326507024
    %v220 = vsel %vm208, %v202, %v219
    %v221 = vsel %vm207, %v218, %v220
    %v222 = vshll.u32 %v182, 8
    %v223 = vmul.u32.u64.compose %v222, %v221
    %v224 = vextract.low.u32 %v223
    %v225 = vextract.high.u32 %v223
    %v226 = vmul.u32.u64.compose %v222, %v217
    %v227 = vextract.low.u32 %v226
    %v228 = vextract.high.u32 %v226
    %v229 = vmul.u32 %v222, %v213
    %v230 = vadd.s32 %v225, %v227
    %vm231 = vc.u32 %v225, %v227
    %v232 = vadd.s32 %v228, 1
    %v233 = vsel %vm231, %v232, %v228
    %v234 = vadd.s32 %v229, %v233
    %v235 = vadd.s32 %v234, 536870912
    %v236 = vshrl.u32 %v235, 30
    %v237 = vshll.u32 %v236, 30
    %v238 = vsub.s32 %v234, %v237
    %vm239 = vcmp.lt.s32.totalorder %v238, 0
    %v240 = vsub.s32 0, %v238
    %v241 = vsel %vm239, %v240, %v238
    %v242 = vclz %v241
    %v243 = vsub.s32 %v242, 2
    %vm244 = vcmp.gt.s32.totalorder 0, %v243
    %v245 = vsel %vm244, 0, %v243
    %v246 = vsub.s32 32, %v245
    %v247 = vshll.u32 %v238, %v245
    %v248 = vshrl.u32 %v230, %v246
    %v249 = vor.u32 %v247, %v248
    %v250 = vsub.s32 4294967266, %v245
    %v251 = vadd.s32 %v250, 127
    %v252 = vshll.u32 %v251, 23
    %v253 = vor.u32 4788187, %v252
    %v254 = vand.u32 2147483647, %v253
    %v256 = vcvt.s32.f32 %v249
    %v257 = vmul.f32 %v256, %v254
    %v258 = vxor.u32 %v257, 2147483648
    %v259 = vsel %vm176, %v258, %v257
    %v260 = vsub.s32 4, %v236
    %v261 = vsel %vm176, %v260, %v236
    %v262 = vsel %vm175, %v70, %v259
    %v263 = vsel %vm175, 0, %v261
    %v264 = vcosq.f32.pop %v262
    %v265 = vsinq.f32.pop %v262
    %vm266 = vweird.f32 %v70
    %v267 = vand.u32 %v263, 3
    %vm268 = vcmp.lt.s32.totalorder %v267, 2
    %vm269 = vcmp.eq.s32.totalorder %v267, 0
    %v270 = vxor.u32 %v265, 2147483648
    %v271 = vsel %vm269, %v264, %v270
    %vm272 = vcmp.eq.s32.totalorder %v267, 2
    %v273 = vxor.u32 %v264, 2147483648
    %v274 = vsel %vm272, %v273, %v265
    %v275 = vsel %vm268, %v271, %v274
    %v276 = vsel %vm266, nan, %v275
    %vm277 = vcmask 7168
    %278 = vst.msk [vmem:[%s3] sm:$0xff] %vm277, %v173
    %279 = vst.msk [vmem:[%s3 + $0x8] sm:$0xff] %vm277, %v276
    // Predicated region
    $region22: #{content_dependent_gating.1} parent=1 // pred_check
      _
    $region23: #{content_dependent_gating.1} parent=1 // pred_check_branch
      %281 = sbr.rel (0) target = $region25
    $region24: #{content_dependent_gating.1} parent=1 // pred_region
      _
    $region25: #{content_dependent_gating.1} parent=1 // pred_fallthru
      _
    // Predicated region
    $region26: #{content_dependent_gating.1} parent=1 // pred_check
      _
    $region27: #{content_dependent_gating.1} parent=1 // pred_check_branch
      %283 = sbr.rel (0) target = $region29
    $region28: #{content_dependent_gating.1} parent=1 // pred_region
      _
    $region29: #{content_dependent_gating.1} parent=1 // pred_fallthru
      _
    %284 = vsyncpa [#allocation3], 1
    %285 = vsyncpa [#allocation4], 1

</llo_original>
